<compile_context>
chip_gen: v7x
topology: tpu7x:2x2x1
jax: 0.10.0
libtpu: 0.0.40
codegen_flags: <defaults>
</compile_context>

<pallas_src>
import math

import jax
import jax.numpy as jnp
import numpy as np
from jax.experimental import pallas as pl
from jax.experimental.pallas import tpu as pltpu

NUM_HEADS = 4
LN_EPS = 1e-5


def mha_kernel(q_ref, k_ref, v_ref, w_ref, misc_ref, o_ref):
    N, F = q_ref.shape
    SN = k_ref.shape[0]
    S = SN // N

    q_in = q_ref[...]                                   # (N, F) residual input

    # ---- unpack lane-dense parameter slabs with static slices ----
    w = w_ref[...]                                      # (F, 4F)
    wq = w[:, 0 * F:1 * F]                              # 1/sqrt(D) pre-folded
    wk = w[:, 1 * F:2 * F]
    wv = w[:, 2 * F:3 * F]
    wo = w[:, 3 * F:4 * F]

    misc = misc_ref[...]                                # (8 + F, 4F)
    bq = misc[0:1, 0 * F:1 * F]                         # 1/sqrt(D) pre-folded
    bk = misc[0:1, 1 * F:2 * F]
    bv = misc[0:1, 2 * F:3 * F]
    bo = misc[0:1, 3 * F:4 * F]
    gamma = misc[1:2, 0 * F:1 * F]
    beta = misc[1:2, 1 * F:2 * F]
    sel = misc[8:8 + F, 0:F]                            # (F, F) block-diagonal head selector

    # ---- projections (plain dots; MXU, f32 accumulation) ----
    Q = jnp.dot(q_in, wq, preferred_element_type=jnp.float32) + bq                      # (N, F)
    K = (jnp.dot(k_ref[...], wk, preferred_element_type=jnp.float32) + bk).reshape(S, N, F)
    V = (jnp.dot(v_ref[...], wv, preferred_element_type=jnp.float32) + bv).reshape(S, N, F)

    # ---- scores for ALL heads, broadcast across each head's D lanes ----
    # scores[s,n,f] = sum_{f' in head(f)} Q[n,f'] * K[s,n,f']  (scaled; scale folded in wq/bq)
    prod = Q[None, :, :] * K                                                             # (S, N, F)
    scores = jnp.dot(prod.reshape(SN, F), sel,
                     preferred_element_type=jnp.float32).reshape(S, N, F)

    # ---- one lane-dense softmax over the sequence axis (per head, per node) ----
    m = jnp.max(scores, axis=0, keepdims=True)                                           # (1, N, F)
    e = jnp.exp(scores - m)                                                              # (S, N, F)
    denom = jnp.sum(e, axis=0, keepdims=True)                                            # (1, N, F)
    attn = e * pl.reciprocal(denom, approx=True)                                         # (S, N, F)
    # TODO(synk): nn.Dropout(0.1) on attention is eval-mode identity here.

    # ---- weighted value: attn is already head-broadcast, so this is a pure elementwise+reduce ----
    weighted = jnp.sum(attn * V, axis=0)                                                 # (N, F)

    # ---- output projection ----
    out = jnp.dot(weighted, wo, preferred_element_type=jnp.float32) + bo                 # (N, F)

    # ---- LayerNorm over feature dim + residual ----
    mu = jnp.mean(out, axis=-1, keepdims=True)
    var = jnp.mean((out - mu) ** 2, axis=-1, keepdims=True)
    normed = (out - mu) * jax.lax.rsqrt(var + LN_EPS)
    o_ref[...] = q_in + (normed * gamma + beta)
    # TODO(synk): mask_idx branch not implemented (forward is exercised with mask_idx=None).


def prepare_params(params, feature_dim, num_heads=NUM_HEADS):
    """One-time host-side parameter prep:
    - transpose weights to (in, out), fold 1/sqrt(head_dim) into the Q projection,
    - pack [wq|wk|wv|wo] into one lane-dense (F, 4F) slab,
    - pack biases, gamma/beta, and the block-diagonal head selector into one (8+F, 4F) slab.
    """
    F_ = feature_dim
    D = F_ // num_heads
    scale = 1.0 / math.sqrt(D)

    wq = (params["wq"].T * scale).astype(jnp.float32)
    wk = params["wk"].T.astype(jnp.float32)
    wv = params["wv"].T.astype(jnp.float32)
    wo = params["wo"].T.astype(jnp.float32)
    w_slab = jnp.concatenate([wq, wk, wv, wo], axis=1)                  # (F, 4F)

    bias_row = jnp.concatenate([params["bq"] * scale, params["bk"],
                                params["bv"], params["bo"]]).astype(jnp.float32)   # (4F,)
    gb_row = jnp.concatenate([params["gamma"], params["beta"],
                              jnp.zeros((2 * F_,), jnp.float32)]).astype(jnp.float32)  # (4F,)

    f_idx = np.arange(F_)
    sel = (f_idx[:, None] // D == f_idx[None, :] // D).astype(np.float32)   # (F, F) block-diag

    misc = np.zeros((8 + F_, 4 * F_), np.float32)
    misc[0, :] = np.asarray(bias_row)
    misc[1, :] = np.asarray(gb_row)
    misc[8:8 + F_, 0:F_] = sel

    return {"w": w_slab, "misc": jnp.asarray(misc)}


def multi_head_attention(query, key, value, prepped):
    """query: (N, F); key/value: (S, N, F) -- same convention as the PyTorch module.
    `prepped` comes from prepare_params() (done once, outside the per-call path)."""
    S, N, F = key.shape
    assert value.shape == key.shape, "key/value shape mismatch"
    assert query.shape == (N, F), "query shape mismatch"
    assert F % NUM_HEADS == 0, "feature_dim must be divisible by num_heads"
    SN = S * N

    # Sequence-major flatten: leading-dim reshape only, no HBM transpose.
    k2 = key.reshape(SN, F)
    v2 = value.reshape(SN, F)

    args = (query, k2, v2, prepped["w"], prepped["misc"])

    flops = (2 * N * F * F            # Q projection
             + 2 * SN * F * F * 2     # K and V projections
             + 2 * SN * F * F         # score selector matmul
             + 2 * N * F * F          # output projection
             + 8 * SN * F)            # elementwise softmax / weighted-value / LN
    transcendentals = SN * F + N * F + N                 # exp + reciprocal + rsqrt
    bytes_accessed = 4 * (N * F                          # query
                          + 2 * SN * F                   # key + value
                          + F * 4 * F                    # weight slab
                          + (8 + F) * 4 * F              # misc slab
                          + N * F)                       # output

    # Grid-less whole-array kernel: the problem (N=16, S=8, F=32) fits trivially in VMEM.
    # For batched/large workloads add a grid with dimension_semantics=("parallel", ...) so
    # v7x's two TensorCores both work and parameters stay resident across grid steps.
    return pl.pallas_call(
        mha_kernel,
        out_shape=jax.ShapeDtypeStruct((N, F), jnp.float32),
        in_specs=[pl.BlockSpec(memory_space=pltpu.MemorySpace.VMEM)] * len(args),
        out_specs=pl.BlockSpec(memory_space=pltpu.MemorySpace.VMEM),
        cost_estimate=pl.CostEstimate(flops=flops,
                                      transcendentals=transcendentals,
                                      bytes_accessed=bytes_accessed),
    )(*args)


def reference(query, key, value, params):
    """Pure-JAX mirror of the PyTorch forward (eval mode, mask_idx=None)."""
    S, N, F = key.shape
    H, D = NUM_HEADS, F // NUM_HEADS
    q = query @ params["wq"].T + params["bq"]
    k = key @ params["wk"].T + params["bk"]
    v = value @ params["wv"].T + params["bv"]
    k = jnp.transpose(k, (1, 0, 2)).reshape(N, S, H, D)
    v = jnp.transpose(v, (1, 0, 2)).reshape(N, S, H, D)
    q = q.reshape(N, H, D)
    scores = jnp.einsum("nhd,nshd->nsh", q, k) / math.sqrt(D)
    attn = jax.nn.softmax(scores, axis=1)
    wv_ = jnp.einsum("nsh,nshd->nhd", attn, v).reshape(N, F)
    out = wv_ @ params["wo"].T + params["bo"]
    mu = out.mean(-1, keepdims=True)
    var = ((out - mu) ** 2).mean(-1, keepdims=True)
    normed = (out - mu) / jnp.sqrt(var + LN_EPS)
    normed = normed * params["gamma"] + params["beta"]
    return query + normed


if __name__ == "__main__":
    N, S, F = 16, 8, 32          # num_nodes, seq_len, feature_dim (head_dim = 8)

    root = jax.random.PRNGKey(0)
    ks = jax.random.split(root, 12)

    query = jax.random.normal(ks[0], (N, F), jnp.float32)
    key_in = jax.random.normal(ks[1], (S, N, F), jnp.float32)
    value_in = jax.random.normal(ks[2], (S, N, F), jnp.float32)

    wscale = 1.0 / math.sqrt(F)
    params = {
        "wq": jax.random.normal(ks[3], (F, F), jnp.float32) * wscale,
        "bq": jax.random.normal(ks[4], (F,), jnp.float32) * 0.01,
        "wk": jax.random.normal(ks[5], (F, F), jnp.float32) * wscale,
        "bk": jax.random.normal(ks[6], (F,), jnp.float32) * 0.01,
        "wv": jax.random.normal(ks[7], (F, F), jnp.float32) * wscale,
        "bv": jax.random.normal(ks[8], (F,), jnp.float32) * 0.01,
        "wo": jax.random.normal(ks[9], (F, F), jnp.float32) * wscale,
        "bo": jax.random.normal(ks[10], (F,), jnp.float32) * 0.01,
        "gamma": jnp.ones((F,), jnp.float32),
        "beta": jnp.zeros((F,), jnp.float32),
    }

    # One-time parameter prep (hoisted out of the per-call path).
    prepped = jax.block_until_ready(prepare_params(params, F))

    out = multi_head_attention(query, key_in, value_in, prepped)
    out = jax.block_until_ready(out)

    ref = jax.block_until_ready(reference(query, key_in, value_in, params))
    assert out.shape == (N, F)
    np.testing.assert_allclose(np.asarray(out), np.asarray(ref), atol=2e-2, rtol=2e-2)

    print("KERNEL_OK")
</pallas_src>

<mosaic_0001>
module attributes {stable_mosaic.version = 11 : i64} {
  func.func @mha_kernel(%arg0: memref<16x32xf32, #tpu.memory_space<vmem>>, %arg1: memref<128x32xf32, #tpu.memory_space<vmem>>, %arg2: memref<128x32xf32, #tpu.memory_space<vmem>>, %arg3: memref<32x128xf32, #tpu.memory_space<vmem>>, %arg4: memref<40x128xf32, #tpu.memory_space<vmem>>, %arg5: memref<16x32xf32, #tpu.memory_space<vmem>>) attributes {dimension_semantics = [], scalar_prefetch = 0 : i64, scratch_operands = 0 : i64, tpu.core_type = #tpu.core_type<tc>} {
    %c0 = arith.constant 0 : index
    %c0_0 = arith.constant 0 : index
    %0 = vector.load %arg0[%c0, %c0_0] : memref<16x32xf32, #tpu.memory_space<vmem>>, vector<16x32xf32>
    %c0_1 = arith.constant 0 : index
    %c0_2 = arith.constant 0 : index
    %1 = vector.load %arg3[%c0_1, %c0_2] : memref<32x128xf32, #tpu.memory_space<vmem>>, vector<32x128xf32>
    %2 = vector.extract_strided_slice %1 {offsets = [0, 0], sizes = [32, 32], strides = [1, 1]} : vector<32x128xf32> to vector<32x32xf32>
    %3 = vector.extract_strided_slice %1 {offsets = [0, 32], sizes = [32, 32], strides = [1, 1]} : vector<32x128xf32> to vector<32x32xf32>
    %4 = vector.extract_strided_slice %1 {offsets = [0, 64], sizes = [32, 32], strides = [1, 1]} : vector<32x128xf32> to vector<32x32xf32>
    %5 = vector.extract_strided_slice %1 {offsets = [0, 96], sizes = [32, 32], strides = [1, 1]} : vector<32x128xf32> to vector<32x32xf32>
    %c0_3 = arith.constant 0 : index
    %c0_4 = arith.constant 0 : index
    %6 = vector.load %arg4[%c0_3, %c0_4] : memref<40x128xf32, #tpu.memory_space<vmem>>, vector<40x128xf32>
    %7 = vector.extract_strided_slice %6 {offsets = [0, 0], sizes = [1, 32], strides = [1, 1]} : vector<40x128xf32> to vector<1x32xf32>
    %8 = vector.extract_strided_slice %6 {offsets = [0, 32], sizes = [1, 32], strides = [1, 1]} : vector<40x128xf32> to vector<1x32xf32>
    %9 = vector.extract_strided_slice %6 {offsets = [0, 64], sizes = [1, 32], strides = [1, 1]} : vector<40x128xf32> to vector<1x32xf32>
    %10 = vector.extract_strided_slice %6 {offsets = [0, 96], sizes = [1, 32], strides = [1, 1]} : vector<40x128xf32> to vector<1x32xf32>
    %11 = vector.extract_strided_slice %6 {offsets = [1, 0], sizes = [1, 32], strides = [1, 1]} : vector<40x128xf32> to vector<1x32xf32>
    %12 = vector.extract_strided_slice %6 {offsets = [1, 32], sizes = [1, 32], strides = [1, 1]} : vector<40x128xf32> to vector<1x32xf32>
    %13 = vector.extract_strided_slice %6 {offsets = [8, 0], sizes = [32, 32], strides = [1, 1]} : vector<40x128xf32> to vector<32x32xf32>
    %cst = arith.constant dense<0.000000e+00> : vector<16x32xf32>
    %14 = tpu.matmul %0, %2, %cst {dimension_numbers = #tpu.dot_dimension_numbers<[1], [0], [0], [1], [0, 0, 1, 1], [], []>} : vector<16x32xf32>, vector<32x32xf32>, vector<16x32xf32> -> vector<16x32xf32>
    %15 = vector.broadcast %7 : vector<1x32xf32> to vector<16x32xf32>
    %16 = arith.addf %14, %15 : vector<16x32xf32>
    %c0_5 = arith.constant 0 : index
    %c0_6 = arith.constant 0 : index
    %17 = vector.load %arg1[%c0_5, %c0_6] : memref<128x32xf32, #tpu.memory_space<vmem>>, vector<128x32xf32>
    %cst_7 = arith.constant dense<0.000000e+00> : vector<128x32xf32>
    %18 = tpu.matmul %17, %3, %cst_7 {dimension_numbers = #tpu.dot_dimension_numbers<[1], [0], [0], [1], [0, 0, 1, 1], [], []>} : vector<128x32xf32>, vector<32x32xf32>, vector<128x32xf32> -> vector<128x32xf32>
    %19 = vector.broadcast %8 : vector<1x32xf32> to vector<128x32xf32>
    %20 = arith.addf %18, %19 : vector<128x32xf32>
    %21 = vector.shape_cast %20 : vector<128x32xf32> to vector<8x16x32xf32>
    %c0_8 = arith.constant 0 : index
    %c0_9 = arith.constant 0 : index
    %22 = vector.load %arg2[%c0_8, %c0_9] : memref<128x32xf32, #tpu.memory_space<vmem>>, vector<128x32xf32>
    %cst_10 = arith.constant dense<0.000000e+00> : vector<128x32xf32>
    %23 = tpu.matmul %22, %4, %cst_10 {dimension_numbers = #tpu.dot_dimension_numbers<[1], [0], [0], [1], [0, 0, 1, 1], [], []>} : vector<128x32xf32>, vector<32x32xf32>, vector<128x32xf32> -> vector<128x32xf32>
    %24 = vector.broadcast %9 : vector<1x32xf32> to vector<128x32xf32>
    %25 = arith.addf %23, %24 : vector<128x32xf32>
    %26 = vector.shape_cast %25 : vector<128x32xf32> to vector<8x16x32xf32>
    %27 = vector.shape_cast %16 : vector<16x32xf32> to vector<1x16x32xf32>
    %28 = vector.broadcast %27 : vector<1x16x32xf32> to vector<8x16x32xf32>
    %29 = arith.mulf %28, %21 : vector<8x16x32xf32>
    %30 = vector.shape_cast %29 : vector<8x16x32xf32> to vector<128x32xf32>
    %cst_11 = arith.constant dense<0.000000e+00> : vector<128x32xf32>
    %31 = tpu.matmul %30, %13, %cst_11 {dimension_numbers = #tpu.dot_dimension_numbers<[1], [0], [0], [1], [0, 0, 1, 1], [], []>} : vector<128x32xf32>, vector<32x32xf32>, vector<128x32xf32> -> vector<128x32xf32>
    %32 = vector.shape_cast %31 : vector<128x32xf32> to vector<8x16x32xf32>
    %cst_12 = arith.constant dense<0xFF800000> : vector<16x32xf32>
    %33 = vector.multi_reduction <maximumf>, %32, %cst_12 [0] : vector<8x16x32xf32> to vector<16x32xf32>
    %34 = vector.shape_cast %33 : vector<16x32xf32> to vector<1x16x32xf32>
    %35 = vector.broadcast %34 : vector<1x16x32xf32> to vector<8x16x32xf32>
    %36 = arith.subf %32, %35 : vector<8x16x32xf32>
    %37 = math.exp %36 : vector<8x16x32xf32>
    %cst_13 = arith.constant dense<0.000000e+00> : vector<16x32xf32>
    %38 = vector.multi_reduction <add>, %37, %cst_13 [0] : vector<8x16x32xf32> to vector<16x32xf32>
    %39 = vector.shape_cast %38 : vector<16x32xf32> to vector<1x16x32xf32>
    %40 = tpu.reciprocal %39 {approx = true} : vector<1x16x32xf32> -> vector<1x16x32xf32>
    %41 = vector.broadcast %40 : vector<1x16x32xf32> to vector<8x16x32xf32>
    %42 = arith.mulf %37, %41 : vector<8x16x32xf32>
    %43 = arith.mulf %42, %26 : vector<8x16x32xf32>
    %cst_14 = arith.constant dense<0.000000e+00> : vector<16x32xf32>
    %44 = vector.multi_reduction <add>, %43, %cst_14 [0] : vector<8x16x32xf32> to vector<16x32xf32>
    %cst_15 = arith.constant dense<0.000000e+00> : vector<16x32xf32>
    %45 = tpu.matmul %44, %5, %cst_15 {dimension_numbers = #tpu.dot_dimension_numbers<[1], [0], [0], [1], [0, 0, 1, 1], [], []>} : vector<16x32xf32>, vector<32x32xf32>, vector<16x32xf32> -> vector<16x32xf32>
    %46 = vector.broadcast %10 : vector<1x32xf32> to vector<16x32xf32>
    %47 = arith.addf %45, %46 : vector<16x32xf32>
    %cst_16 = arith.constant dense<0.000000e+00> : vector<16xf32>
    %48 = vector.multi_reduction <add>, %47, %cst_16 [1] : vector<16x32xf32> to vector<16xf32>
    %49 = vector.shape_cast %48 : vector<16xf32> to vector<16x1xf32>
    %cst_17 = arith.constant 3.200000e+01 : f32
    %50 = vector.broadcast %cst_17 : f32 to vector<16x1xf32>
    %51 = arith.divf %49, %50 : vector<16x1xf32>
    %52 = vector.broadcast %51 : vector<16x1xf32> to vector<16x32xf32>
    %53 = arith.subf %47, %52 : vector<16x32xf32>
    %54 = arith.mulf %53, %53 : vector<16x32xf32>
    %cst_18 = arith.constant dense<0.000000e+00> : vector<16xf32>
    %55 = vector.multi_reduction <add>, %54, %cst_18 [1] : vector<16x32xf32> to vector<16xf32>
    %56 = vector.shape_cast %55 : vector<16xf32> to vector<16x1xf32>
    %cst_19 = arith.constant 3.200000e+01 : f32
    %57 = vector.broadcast %cst_19 : f32 to vector<16x1xf32>
    %58 = arith.divf %56, %57 : vector<16x1xf32>
    %59 = vector.broadcast %51 : vector<16x1xf32> to vector<16x32xf32>
    %60 = arith.subf %47, %59 : vector<16x32xf32>
    %cst_20 = arith.constant 9.99999974E-6 : f32
    %61 = vector.broadcast %cst_20 : f32 to vector<16x1xf32>
    %62 = arith.addf %58, %61 : vector<16x1xf32>
    %63 = math.rsqrt %62 : vector<16x1xf32>
    %64 = vector.broadcast %63 : vector<16x1xf32> to vector<16x32xf32>
    %65 = arith.mulf %60, %64 : vector<16x32xf32>
    %66 = vector.broadcast %11 : vector<1x32xf32> to vector<16x32xf32>
    %67 = arith.mulf %65, %66 : vector<16x32xf32>
    %68 = vector.broadcast %12 : vector<1x32xf32> to vector<16x32xf32>
    %69 = arith.addf %67, %68 : vector<16x32xf32>
    %70 = arith.addf %0, %69 : vector<16x32xf32>
    %c0_21 = arith.constant 0 : index
    %c0_22 = arith.constant 0 : index
    %71 = vector.load %arg5[%c0_21, %c0_22] : memref<16x32xf32, #tpu.memory_space<vmem>>, vector<16x32xf32>
    tpu.vector_store %arg5[%c0_21, %c0_22], %70 {strides = array<i32>} : memref<16x32xf32, #tpu.memory_space<vmem>>, vector<16x32xf32>,
    return
  }
}

</mosaic_0001>

<llo_original>
// kernel: tpu_custom_call.1
$region0: #{tpu_custom_call.1}
  #allocation0 [shape = 'u32[]', space=smem, size = 0x4, offset = 0x4, fixed_abs, tag = 'smem constant byte address 0x4 - core index']
  #allocation1 [shape = 'u32[144,128]{1,0:T(1,128)}', space=vmem, size = 0x12000, scoped, tag = 'internal scratch']
  %s0 = inlined_call_operand.vmem [shape: f32[16,32], index: 0, kind: input, shape index: {}]
  %s1 = inlined_call_operand.vmem [shape: f32[128,32], index: 1, kind: input, shape index: {}]
  %s2 = inlined_call_operand.vmem [shape: f32[128,32], index: 2, kind: input, shape index: {}]
  %s3 = inlined_call_operand.vmem [shape: f32[32,128], index: 3, kind: input, shape index: {}]
  %s4 = inlined_call_operand.vmem [shape: f32[40,128], index: 4, kind: input, shape index: {}]
  %s5 = inlined_call_operand.hbm [shape: f32[16,32], index: 5, kind: output, shape index: {}]
  %s6 = sld [smem:[#allocation0]]
  $region30: #{tpu_custom_call.1} parent=0
    _
  %s8 = ssub.s32 1, %s6
  %s9 = scalar_select 0, %s8, %s6
  $region1: #{tpu_custom_call.1} parent=0
    #allocation2 [shape = 'u8[8192]{0}', space=vmem, size = 0x2000, scoped, tag = 'output window, operand 0, single buffered']
    #allocation3 [shape = 's32[1]{0}', space=sflag, size = 0x4, scoped, tag = 'scoped memory for tpu_custom_call.1']
    %10 = vsyncpa [#allocation3], 0
    // Predicated region
    $region2: #{tpu_custom_call.1} parent=1 // pred_check
      _
    $region3: #{tpu_custom_call.1} parent=1 // pred_check_branch
      %12 = sbr.rel (0) target = $region5
    $region4: #{tpu_custom_call.1} parent=1 // pred_region
      _
    $region5: #{tpu_custom_call.1} parent=1 // pred_fallthru
      _
    // Predicated region
    $region6: #{tpu_custom_call.1} parent=1 // pred_check
      _
    $region7: #{tpu_custom_call.1} parent=1 // pred_check_branch
      %14 = sbr.rel (0) target = $region9
    $region8: #{tpu_custom_call.1} parent=1 // pred_region
      _
    $region9: #{tpu_custom_call.1} parent=1 // pred_fallthru
      _
    // Predicated region
    $region10: #{tpu_custom_call.1} parent=1 // pred_check
      _
    $region11: #{tpu_custom_call.1} parent=1 // pred_check_branch
      %16 = sbr.rel (0) target = $region13
    $region12: #{tpu_custom_call.1} parent=1 // pred_region
      _
    $region13: #{tpu_custom_call.1} parent=1 // pred_fallthru
      _
    // Predicated region
    $region14: #{tpu_custom_call.1} parent=1 // pred_check
      _
    $region15: #{tpu_custom_call.1} parent=1 // pred_check_branch
      %18 = sbr.rel (0) target = $region17
    $region16: #{tpu_custom_call.1} parent=1 // pred_region
      _
    $region17: #{tpu_custom_call.1} parent=1 // pred_fallthru
      _
    // Predicated region
    $region18: #{tpu_custom_call.1} parent=1 // pred_check
      _
    $region19: #{tpu_custom_call.1} parent=1 // pred_check_branch
      %20 = sbr.rel (0) target = $region21
    $region20: #{tpu_custom_call.1} parent=1 // pred_region
      _
    $region21: #{tpu_custom_call.1} parent=1 // pred_fallthru
      _
    %v21 = vld [vmem:[%s0] sm:$0xff]
    %v22 = vld [vmem:[%s0 + $0x8] sm:$0xff]
    %v23 = vld [vmem:[%s3] sm:$0xff]
    %v24 = vld [vmem:[%s3 + $0x8] sm:$0xff]
    %v25 = vld [vmem:[%s3 + $0x10] sm:$0xff]
    %v26 = vld [vmem:[%s3 + $0x18] sm:$0xff]
    %v27 = vld [vmem:[%s4] sm:$0xff]
    %v28 = vld [vmem:[%s4 + $0x8] sm:$0xff]
    %v29 = vld [vmem:[%s4 + $0x10] sm:$0xff]
    %v30 = vld [vmem:[%s4 + $0x18] sm:$0xff]
    %v31 = vld [vmem:[%s4 + $0x20] sm:$0xff]
    %v32 = vlaneseq
    %v33 = vshrl.u32 %v32, 7
    %v34 = vsub.s32 0, %v33
    %v35 = vrot.slane %v27, %v34
    %vm36 = vcmask 261120
    %v38 = vsel %vm36, %v21, 0
    %v41 = vsel %vm36, %v22, 0
    %43 = vmatprep.subr.mxu0 0.0
    %44 = vmatpush1.msra.mxu0 %v23
    %45 = vmatprep.subr.mxu0 0.0
    %46 = vmatpush1.msra.mxu0 %v24
    %47 = vmatprep.subr.mxu0 0.0
    %48 = vmatpush1.msra.mxu0 %v25
    %49 = vmatprep.subr.mxu0 0.0
    %50 = vmatpush1.msra.mxu0 %v26
    %51 = vmatprep.subr.mxu0 0.0
    %52 = vmatpush1.msra.mxu0 0.0
    %53 = vmatprep.subr.mxu0 0.0
    %54 = vmatpush1.msra.mxu0 0.0
    %55 = vmatprep.subr.mxu0 0.0
    %56 = vmatpush1.msra.mxu0 0.0
    %57 = vmatprep.subr.mxu0 0.0
    %58 = vmatpush1.msra.mxu0 0.0
    %59 = vmatprep.subr.mxu0 0.0
    %60 = vmatpush1.msra.mxu0 0.0
    %61 = vmatprep.subr.mxu0 0.0
    %62 = vmatpush1.msra.mxu0 0.0
    %63 = vmatprep.subr.mxu0 0.0
    %64 = vmatpush1.msra.mxu0 0.0
    %65 = vmatprep.subr.mxu0 0.0
    %66 = vmatpush1.msra.mxu0 0.0
    %67 = vmatprep.subr.mxu0 0.0
    %68 = vmatpush1.msra.mxu0 0.0
    %69 = vmatprep.subr.mxu0 0.0
    %70 = vmatpush1.msra.mxu0 0.0
    %71 = vmatprep.subr.mxu0 0.0
    %72 = vmatpush1.msra.mxu0 0.0
    %73 = vmatprep.subr.mxu0 0.0
    %74 = vmatpush1.msra.mxu0 0.0
    %75 = vmatprep.subr.mxu0 0.0
    %76 = vmatpush1.msra.mxu0 0.0
    %77 = vmatprep.subr.mxu0 0.0
    %78 = vmatpush1.msra.mxu0 0.0
    %79 = vmatprep.subr.mxu0 0.0
    %80 = vmatpush1.msra.mxu0 0.0
    %81 = vmatprep.subr.mxu0 0.0
    %82 = vmatpush1.msra.mxu0 0.0
    %83 = vmatprep.subr.mxu0 0.0
    %84 = vmatpush1.msra.mxu0 0.0
    %85 = vmatprep.subr.mxu0 0.0
    %86 = vmatpush1.msra.mxu0 0.0
    %87 = vmatprep.subr.mxu0 0.0
    %88 = vmatpush1.msra.mxu0 0.0
    %89 = vmatprep.subr.mxu0 0.0
    %90 = vmatpush1.msra.mxu0 0.0
    %91 = vmatprep.subr.mxu0 0.0
    %92 = vmatpush1.msra.mxu0 0.0
    %93 = vmatprep.subr.mxu0 0.0
    %94 = vmatpush1.msra.mxu0 0.0
    %95 = vmatprep.subr.mxu0 0.0
    %96 = vmatpush1.msra.mxu0 0.0
    %97 = vmatprep.subr.mxu0 0.0
    %98 = vmatpush1.msra.mxu0 0.0
    %99 = vmatprep.subr.mxu0 0.0
    %100 = vmatpush1.msra.mxu0 0.0
    %101 = vmatprep.subr.mxu0 0.0
    %102 = vmatpush1.msra.mxu0 0.0
    %103 = vmatprep.subr.mxu0 0.0
    %104 = vmatpush1.msra.mxu0 0.0
    %105 = vmatprep.subr.mxu0 0.0
    %106 = vmatpush1.msra.mxu0 0.0
    %107 = vmatprep.mubr.f32.mxu0 0.0
    %108 = vmatmul.mubr.f32.gmra.mrb[0].mxu0 %v38
    %v109 = vpop.f32.mrb[0].mxu0
    %v110 = vadd.f32 %v35, %v109
    %v111 = vpop.f32.mrb[0].mxu0
    %112 = vmatprep.mubr.f32.mxu0 0.0
    %113 = vmatmul.mubr.f32.gmra.mrb[0].mxu0 %v41
    %v114 = vpop.f32.mrb[0].mxu0
    %v115 = vadd.f32 %v35, %v114
    %v116 = vpop.f32.mrb[0].mxu0
    %117 = vdwg.mxu0
    %v118 = vld [vmem:[%s1] sm:$0xff]
    %v119 = vld [vmem:[%s1 + $0x8] sm:$0xff]
    %v120 = vld [vmem:[%s1 + $0x10] sm:$0xff]
    %v121 = vld [vmem:[%s1 + $0x18] sm:$0xff]
    %v122 = vld [vmem:[%s1 + $0x20] sm:$0xff]
    %v123 = vld [vmem:[%s1 + $0x28] sm:$0xff]
    %v124 = vld [vmem:[%s1 + $0x30] sm:$0xff]
    %v125 = vld [vmem:[%s1 + $0x38] sm:$0xff]
    %v126 = vld [vmem:[%s1 + $0x40] sm:$0xff]
    %v127 = vld [vmem:[%s1 + $0x48] sm:$0xff]
    %v128 = vld [vmem:[%s1 + $0x50] sm:$0xff]
    %v129 = vld [vmem:[%s1 + $0x58] sm:$0xff]
    %v130 = vld [vmem:[%s1 + $0x60] sm:$0xff]
    %v131 = vld [vmem:[%s1 + $0x68] sm:$0xff]
    %v132 = vld [vmem:[%s1 + $0x70] sm:$0xff]
    %v133 = vld [vmem:[%s1 + $0x78] sm:$0xff]
    %138 = vrot.lane.b32.xlu0 %v23, 96
    %v139 = vpop.permute.xlu0 %138
    %140 = vrot.lane.b32.xlu0 %v24, 96
    %v141 = vpop.permute.xlu0 %140
    %142 = vrot.lane.b32.xlu0 %v25, 96
    %v143 = vpop.permute.xlu0 %142
    %144 = vrot.lane.b32.xlu0 %v26, 96
    %v145 = vpop.permute.xlu0 %144
    %151 = vrot.lane.b32.xlu0 %v35, 96
    %v152 = vpop.permute.xlu0 %151
    %v155 = vsel %vm36, %v118, 0
    %v158 = vsel %vm36, %v119, 0
    %v161 = vsel %vm36, %v120, 0
    %v164 = vsel %vm36, %v121, 0
    %v167 = vsel %vm36, %v122, 0
    %v170 = vsel %vm36, %v123, 0
    %v173 = vsel %vm36, %v124, 0
    %v176 = vsel %vm36, %v125, 0
    %v179 = vsel %vm36, %v126, 0
    %v182 = vsel %vm36, %v127, 0
    %v185 = vsel %vm36, %v128, 0
    %v188 = vsel %vm36, %v129, 0
    %v191 = vsel %vm36, %v130, 0
    %v194 = vsel %vm36, %v131, 0
    %v197 = vsel %vm36, %v132, 0
    %v200 = vsel %vm36, %v133, 0
    %202 = vmatprep.subr.mxu0 0.0
    %203 = vmatpush1.msra.mxu0 %v139
    %204 = vmatprep.subr.mxu0 0.0
    %205 = vmatpush1.msra.mxu0 %v141
    %206 = vmatprep.subr.mxu0 0.0
    %207 = vmatpush1.msra.mxu0 %v143
    %208 = vmatprep.subr.mxu0 0.0
    %209 = vmatpush1.msra.mxu0 %v145
    %210 = vmatprep.subr.mxu0 0.0
    %211 = vmatpush1.msra.mxu0 0.0
    %212 = vmatprep.subr.mxu0 0.0
    %213 = vmatpush1.msra.mxu0 0.0
    %214 = vmatprep.subr.mxu0 0.0
    %215 = vmatpush1.msra.mxu0 0.0
    %216 = vmatprep.subr.mxu0 0.0
    %217 = vmatpush1.msra.mxu0 0.0
    %218 = vmatprep.subr.mxu0 0.0
    %219 = vmatpush1.msra.mxu0 0.0
    %220 = vmatprep.subr.mxu0 0.0
    %221 = vmatpush1.msra.mxu0 0.0
    %222 = vmatprep.subr.mxu0 0.0
    %223 = vmatpush1.msra.mxu0 0.0
    %224 = vmatprep.subr.mxu0 0.0
    %225 = vmatpush1.msra.mxu0 0.0
    %226 = vmatprep.subr.mxu0 0.0
    %227 = vmatpush1.msra.mxu0 0.0
    %228 = vmatprep.subr.mxu0 0.0
    %229 = vmatpush1.msra.mxu0 0.0
    %230 = vmatprep.subr.mxu0 0.0
    %231 = vmatpush1.msra.mxu0 0.0
    %232 = vmatprep.subr.mxu0 0.0
    %233 = vmatpush1.msra.mxu0 0.0
    %234 = vmatprep.subr.mxu0 0.0
    %235 = vmatpush1.msra.mxu0 0.0
    %236 = vmatprep.subr.mxu0 0.0
    %237 = vmatpush1.msra.mxu0 0.0
    %238 = vmatprep.subr.mxu0 0.0
    %239 = vmatpush1.msra.mxu0 0.0
    %240 = vmatprep.subr.mxu0 0.0
    %241 = vmatpush1.msra.mxu0 0.0
    %242 = vmatprep.subr.mxu0 0.0
    %243 = vmatpush1.msra.mxu0 0.0
    %244 = vmatprep.subr.mxu0 0.0
    %245 = vmatpush1.msra.mxu0 0.0
    %246 = vmatprep.subr.mxu0 0.0
    %247 = vmatpush1.msra.mxu0 0.0
    %248 = vmatprep.subr.mxu0 0.0
    %249 = vmatpush1.msra.mxu0 0.0
    %250 = vmatprep.subr.mxu0 0.0
    %251 = vmatpush1.msra.mxu0 0.0
    %252 = vmatprep.subr.mxu0 0.0
    %253 = vmatpush1.msra.mxu0 0.0
    %254 = vmatprep.subr.mxu0 0.0
    %255 = vmatpush1.msra.mxu0 0.0
    %256 = vmatprep.subr.mxu0 0.0
    %257 = vmatpush1.msra.mxu0 0.0
    %258 = vmatprep.subr.mxu0 0.0
    %259 = vmatpush1.msra.mxu0 0.0
    %260 = vmatprep.subr.mxu0 0.0
    %261 = vmatpush1.msra.mxu0 0.0
    %262 = vmatprep.subr.mxu0 0.0
    %263 = vmatpush1.msra.mxu0 0.0
    %264 = vmatprep.subr.mxu0 0.0
    %265 = vmatpush1.msra.mxu0 0.0
    %266 = vmatprep.mubr.f32.mxu0 0.0
    %267 = vmatmul.mubr.f32.gmra.mrb[0].mxu0 %v155
    %v268 = vpop.f32.mrb[0].mxu0
    %v269 = vadd.f32 %v152, %v268
    %v270 = vpop.f32.mrb[0].mxu0
    %271 = vmatprep.mubr.f32.mxu0 0.0
    %272 = vmatmul.mubr.f32.gmra.mrb[0].mxu0 %v158
    %v273 = vpop.f32.mrb[0].mxu0
    %v274 = vadd.f32 %v152, %v273
    %v275 = vpop.f32.mrb[0].mxu0
    %276 = vmatprep.mubr.f32.mxu0 0.0
    %277 = vmatmul.mubr.f32.gmra.mrb[0].mxu0 %v161
    %v278 = vpop.f32.mrb[0].mxu0
    %v279 = vadd.f32 %v152, %v278
    %v280 = vpop.f32.mrb[0].mxu0
    %281 = vmatprep.mubr.f32.mxu0 0.0
    %282 = vmatmul.mubr.f32.gmra.mrb[0].mxu0 %v164
    %v283 = vpop.f32.mrb[0].mxu0
    %v284 = vadd.f32 %v152, %v283
    %v285 = vpop.f32.mrb[0].mxu0
    %286 = vmatprep.mubr.f32.mxu0 0.0
    %287 = vmatmul.mubr.f32.gmra.mrb[0].mxu0 %v167
    %v288 = vpop.f32.mrb[0].mxu0
    %v289 = vadd.f32 %v152, %v288
    %v290 = vpop.f32.mrb[0].mxu0
    %291 = vmatprep.mubr.f32.mxu0 0.0
    %292 = vmatmul.mubr.f32.gmra.mrb[0].mxu0 %v170
    %v293 = vpop.f32.mrb[0].mxu0
    %v294 = vadd.f32 %v152, %v293
    %v295 = vpop.f32.mrb[0].mxu0
    %296 = vmatprep.mubr.f32.mxu0 0.0
    %297 = vmatmul.mubr.f32.gmra.mrb[0].mxu0 %v173
    %v298 = vpop.f32.mrb[0].mxu0
    %v299 = vadd.f32 %v152, %v298
    %v300 = vpop.f32.mrb[0].mxu0
    %301 = vmatprep.mubr.f32.mxu0 0.0
    %302 = vmatmul.mubr.f32.gmra.mrb[0].mxu0 %v176
    %v303 = vpop.f32.mrb[0].mxu0
    %v304 = vadd.f32 %v152, %v303
    %v305 = vpop.f32.mrb[0].mxu0
    %306 = vmatprep.mubr.f32.mxu0 0.0
    %307 = vmatmul.mubr.f32.gmra.mrb[0].mxu0 %v179
    %v308 = vpop.f32.mrb[0].mxu0
    %v309 = vadd.f32 %v152, %v308
    %v310 = vpop.f32.mrb[0].mxu0
    %311 = vmatprep.mubr.f32.mxu0 0.0
    %312 = vmatmul.mubr.f32.gmra.mrb[0].mxu0 %v182
    %v313 = vpop.f32.mrb[0].mxu0
    %v314 = vadd.f32 %v152, %v313
    %v315 = vpop.f32.mrb[0].mxu0
    %316 = vmatprep.mubr.f32.mxu0 0.0
    %317 = vmatmul.mubr.f32.gmra.mrb[0].mxu0 %v185
    %v318 = vpop.f32.mrb[0].mxu0
    %v319 = vadd.f32 %v152, %v318
    %v320 = vpop.f32.mrb[0].mxu0
    %321 = vmatprep.mubr.f32.mxu0 0.0
    %322 = vmatmul.mubr.f32.gmra.mrb[0].mxu0 %v188
    %v323 = vpop.f32.mrb[0].mxu0
    %v324 = vadd.f32 %v152, %v323
    %v325 = vpop.f32.mrb[0].mxu0
    %326 = vmatprep.mubr.f32.mxu0 0.0
    %327 = vmatmul.mubr.f32.gmra.mrb[0].mxu0 %v191
    %v328 = vpop.f32.mrb[0].mxu0
    %v329 = vadd.f32 %v152, %v328
    %v330 = vpop.f32.mrb[0].mxu0
    %331 = vmatprep.mubr.f32.mxu0 0.0
    %332 = vmatmul.mubr.f32.gmra.mrb[0].mxu0 %v194
    %v333 = vpop.f32.mrb[0].mxu0
    %v334 = vadd.f32 %v152, %v333
    %v335 = vpop.f32.mrb[0].mxu0
    %336 = vmatprep.mubr.f32.mxu0 0.0
    %337 = vmatmul.mubr.f32.gmra.mrb[0].mxu0 %v197
    %v338 = vpop.f32.mrb[0].mxu0
    %v339 = vadd.f32 %v152, %v338
    %v340 = vpop.f32.mrb[0].mxu0
    %341 = vmatprep.mubr.f32.mxu0 0.0
    %342 = vmatmul.mubr.f32.gmra.mrb[0].mxu0 %v200
    %v343 = vpop.f32.mrb[0].mxu0
    %v344 = vadd.f32 %v152, %v343
    %v345 = vpop.f32.mrb[0].mxu0
    %346 = vdwg.mxu0
    %v347 = vld [vmem:[%s2] sm:$0xff]
    %v348 = vld [vmem:[%s2 + $0x8] sm:$0xff]
    %v349 = vld [vmem:[%s2 + $0x10] sm:$0xff]
    %v350 = vld [vmem:[%s2 + $0x18] sm:$0xff]
    %v351 = vld [vmem:[%s2 + $0x20] sm:$0xff]
    %v352 = vld [vmem:[%s2 + $0x28] sm:$0xff]
    %v353 = vld [vmem:[%s2 + $0x30] sm:$0xff]
    %v354 = vld [vmem:[%s2 + $0x38] sm:$0xff]
    %v355 = vld [vmem:[%s2 + $0x40] sm:$0xff]
    %v356 = vld [vmem:[%s2 + $0x48] sm:$0xff]
    %v357 = vld [vmem:[%s2 + $0x50] sm:$0xff]
    %v358 = vld [vmem:[%s2 + $0x58] sm:$0xff]
    %v359 = vld [vmem:[%s2 + $0x60] sm:$0xff]
    %v360 = vld [vmem:[%s2 + $0x68] sm:$0xff]
    %v361 = vld [vmem:[%s2 + $0x70] sm:$0xff]
    %v362 = vld [vmem:[%s2 + $0x78] sm:$0xff]
    %363 = vrot.lane.b32.xlu0 %v23, 64
    %v364 = vpop.permute.xlu0 %363
    %365 = vrot.lane.b32.xlu0 %v24, 64
    %v366 = vpop.permute.xlu0 %365
    %367 = vrot.lane.b32.xlu0 %v25, 64
    %v368 = vpop.permute.xlu0 %367
    %369 = vrot.lane.b32.xlu0 %v26, 64
    %v370 = vpop.permute.xlu0 %369
    %375 = vrot.lane.b32.xlu0 %v35, 64
    %v376 = vpop.permute.xlu0 %375
    %v379 = vsel %vm36, %v347, 0
    %v382 = vsel %vm36, %v348, 0
    %v385 = vsel %vm36, %v349, 0
    %v388 = vsel %vm36, %v350, 0
    %v391 = vsel %vm36, %v351, 0
    %v394 = vsel %vm36, %v352, 0
    %v397 = vsel %vm36, %v353, 0
    %v400 = vsel %vm36, %v354, 0
    %v403 = vsel %vm36, %v355, 0
    %v406 = vsel %vm36, %v356, 0
    %v409 = vsel %vm36, %v357, 0
    %v412 = vsel %vm36, %v358, 0
    %v415 = vsel %vm36, %v359, 0
    %v418 = vsel %vm36, %v360, 0
    %v421 = vsel %vm36, %v361, 0
    %v424 = vsel %vm36, %v362, 0
    %426 = vmatprep.subr.mxu0 0.0
    %427 = vmatpush1.msra.mxu0 %v364
    %428 = vmatprep.subr.mxu0 0.0
    %429 = vmatpush1.msra.mxu0 %v366
    %430 = vmatprep.subr.mxu0 0.0
    %431 = vmatpush1.msra.mxu0 %v368
    %432 = vmatprep.subr.mxu0 0.0
    %433 = vmatpush1.msra.mxu0 %v370
    %434 = vmatprep.subr.mxu0 0.0
    %435 = vmatpush1.msra.mxu0 0.0
    %436 = vmatprep.subr.mxu0 0.0
    %437 = vmatpush1.msra.mxu0 0.0
    %438 = vmatprep.subr.mxu0 0.0
    %439 = vmatpush1.msra.mxu0 0.0
    %440 = vmatprep.subr.mxu0 0.0
    %441 = vmatpush1.msra.mxu0 0.0
    %442 = vmatprep.subr.mxu0 0.0
    %443 = vmatpush1.msra.mxu0 0.0
    %444 = vmatprep.subr.mxu0 0.0
    %445 = vmatpush1.msra.mxu0 0.0
    %446 = vmatprep.subr.mxu0 0.0
    %447 = vmatpush1.msra.mxu0 0.0
    %448 = vmatprep.subr.mxu0 0.0
    %449 = vmatpush1.msra.mxu0 0.0
    %450 = vmatprep.subr.mxu0 0.0
    %451 = vmatpush1.msra.mxu0 0.0
    %452 = vmatprep.subr.mxu0 0.0
    %453 = vmatpush1.msra.mxu0 0.0
    %454 = vmatprep.subr.mxu0 0.0
    %455 = vmatpush1.msra.mxu0 0.0
    %456 = vmatprep.subr.mxu0 0.0
    %457 = vmatpush1.msra.mxu0 0.0
    %458 = vmatprep.subr.mxu0 0.0
    %459 = vmatpush1.msra.mxu0 0.0
    %460 = vmatprep.subr.mxu0 0.0
    %461 = vmatpush1.msra.mxu0 0.0
    %462 = vmatprep.subr.mxu0 0.0
    %463 = vmatpush1.msra.mxu0 0.0
    %464 = vmatprep.subr.mxu0 0.0
    %465 = vmatpush1.msra.mxu0 0.0
    %466 = vmatprep.subr.mxu0 0.0
    %467 = vmatpush1.msra.mxu0 0.0
    %468 = vmatprep.subr.mxu0 0.0
    %469 = vmatpush1.msra.mxu0 0.0
    %470 = vmatprep.subr.mxu0 0.0
    %471 = vmatpush1.msra.mxu0 0.0
    %472 = vmatprep.subr.mxu0 0.0
    %473 = vmatpush1.msra.mxu0 0.0
    %474 = vmatprep.subr.mxu0 0.0
    %475 = vmatpush1.msra.mxu0 0.0
    %476 = vmatprep.subr.mxu0 0.0
    %477 = vmatpush1.msra.mxu0 0.0
    %478 = vmatprep.subr.mxu0 0.0
    %479 = vmatpush1.msra.mxu0 0.0
    %480 = vmatprep.subr.mxu0 0.0
    %481 = vmatpush1.msra.mxu0 0.0
    %482 = vmatprep.subr.mxu0 0.0
    %483 = vmatpush1.msra.mxu0 0.0
    %484 = vmatprep.subr.mxu0 0.0
    %485 = vmatpush1.msra.mxu0 0.0
    %486 = vmatprep.subr.mxu0 0.0
    %487 = vmatpush1.msra.mxu0 0.0
    %488 = vmatprep.subr.mxu0 0.0
    %489 = vmatpush1.msra.mxu0 0.0
    %490 = vmatprep.mubr.f32.mxu0 0.0
    %491 = vmatmul.mubr.f32.gmra.mrb[0].mxu0 %v379
    %v492 = vpop.f32.mrb[0].mxu0
    %v493 = vadd.f32 %v376, %v492
    %v494 = vpop.f32.mrb[0].mxu0
    %495 = vmatprep.mubr.f32.mxu0 0.0
    %496 = vmatmul.mubr.f32.gmra.mrb[0].mxu0 %v382
    %v497 = vpop.f32.mrb[0].mxu0
    %v498 = vadd.f32 %v376, %v497
    %v499 = vpop.f32.mrb[0].mxu0
    %500 = vmatprep.mubr.f32.mxu0 0.0
    %501 = vmatmul.mubr.f32.gmra.mrb[0].mxu0 %v385
    %v502 = vpop.f32.mrb[0].mxu0
    %v503 = vadd.f32 %v376, %v502
    %v504 = vpop.f32.mrb[0].mxu0
    %505 = vmatprep.mubr.f32.mxu0 0.0
    %506 = vmatmul.mubr.f32.gmra.mrb[0].mxu0 %v388
    %v507 = vpop.f32.mrb[0].mxu0
    %v508 = vadd.f32 %v376, %v507
    %v509 = vpop.f32.mrb[0].mxu0
    %510 = vmatprep.mubr.f32.mxu0 0.0
    %511 = vmatmul.mubr.f32.gmra.mrb[0].mxu0 %v391
    %v512 = vpop.f32.mrb[0].mxu0
    %v513 = vadd.f32 %v376, %v512
    %v514 = vpop.f32.mrb[0].mxu0
    %515 = vmatprep.mubr.f32.mxu0 0.0
    %516 = vmatmul.mubr.f32.gmra.mrb[0].mxu0 %v394
    %v517 = vpop.f32.mrb[0].mxu0
    %v518 = vadd.f32 %v376, %v517
    %v519 = vpop.f32.mrb[0].mxu0
    %520 = vmatprep.mubr.f32.mxu0 0.0
    %521 = vmatmul.mubr.f32.gmra.mrb[0].mxu0 %v397
    %v522 = vpop.f32.mrb[0].mxu0
    %v523 = vadd.f32 %v376, %v522
    %v524 = vpop.f32.mrb[0].mxu0
    %525 = vmatprep.mubr.f32.mxu0 0.0
    %526 = vmatmul.mubr.f32.gmra.mrb[0].mxu0 %v400
    %v527 = vpop.f32.mrb[0].mxu0
    %v528 = vadd.f32 %v376, %v527
    %v529 = vpop.f32.mrb[0].mxu0
    %530 = vmatprep.mubr.f32.mxu0 0.0
    %531 = vmatmul.mubr.f32.gmra.mrb[0].mxu0 %v403
    %v532 = vpop.f32.mrb[0].mxu0
    %v533 = vadd.f32 %v376, %v532
    %v534 = vpop.f32.mrb[0].mxu0
    %535 = vmatprep.mubr.f32.mxu0 0.0
    %536 = vmatmul.mubr.f32.gmra.mrb[0].mxu0 %v406
    %v537 = vpop.f32.mrb[0].mxu0
    %v538 = vadd.f32 %v376, %v537
    %v539 = vpop.f32.mrb[0].mxu0
    %540 = vmatprep.mubr.f32.mxu0 0.0
    %541 = vmatmul.mubr.f32.gmra.mrb[0].mxu0 %v409
    %v542 = vpop.f32.mrb[0].mxu0
    %v543 = vadd.f32 %v376, %v542
    %v544 = vpop.f32.mrb[0].mxu0
    %545 = vmatprep.mubr.f32.mxu0 0.0
    %546 = vmatmul.mubr.f32.gmra.mrb[0].mxu0 %v412
    %v547 = vpop.f32.mrb[0].mxu0
    %v548 = vadd.f32 %v376, %v547
    %v549 = vpop.f32.mrb[0].mxu0
    %550 = vmatprep.mubr.f32.mxu0 0.0
    %551 = vmatmul.mubr.f32.gmra.mrb[0].mxu0 %v415
    %v552 = vpop.f32.mrb[0].mxu0
    %v553 = vadd.f32 %v376, %v552
    %v554 = vpop.f32.mrb[0].mxu0
    %555 = vmatprep.mubr.f32.mxu0 0.0
    %556 = vmatmul.mubr.f32.gmra.mrb[0].mxu0 %v418
    %v557 = vpop.f32.mrb[0].mxu0
    %v558 = vadd.f32 %v376, %v557
    %v559 = vpop.f32.mrb[0].mxu0
    %560 = vmatprep.mubr.f32.mxu0 0.0
    %561 = vmatmul.mubr.f32.gmra.mrb[0].mxu0 %v421
    %v562 = vpop.f32.mrb[0].mxu0
    %v563 = vadd.f32 %v376, %v562
    %v564 = vpop.f32.mrb[0].mxu0
    %565 = vmatprep.mubr.f32.mxu0 0.0
    %566 = vmatmul.mubr.f32.gmra.mrb[0].mxu0 %v424
    %v567 = vpop.f32.mrb[0].mxu0
    %v568 = vadd.f32 %v376, %v567
    %v569 = vpop.f32.mrb[0].mxu0
    %570 = vdwg.mxu0
    %v571 = vmul.f32 %v110, %v269
    %v572 = vmul.f32 %v115, %v274
    %v573 = vmul.f32 %v110, %v279
    %v574 = vmul.f32 %v115, %v284
    %v575 = vmul.f32 %v110, %v289
    %v576 = vmul.f32 %v115, %v294
    %v577 = vmul.f32 %v110, %v299
    %v578 = vmul.f32 %v115, %v304
    %v579 = vmul.f32 %v110, %v309
    %v580 = vmul.f32 %v115, %v314
    %v581 = vmul.f32 %v110, %v319
    %v582 = vmul.f32 %v115, %v324
    %v583 = vmul.f32 %v110, %v329
    %v584 = vmul.f32 %v115, %v334
    %v585 = vmul.f32 %v110, %v339
    %v586 = vmul.f32 %v115, %v344
    %v588 = vsel %vm36, %v571, 0
    %v591 = vsel %vm36, %v572, 0
    %v594 = vsel %vm36, %v573, 0
    %v597 = vsel %vm36, %v574, 0
    %v600 = vsel %vm36, %v575, 0
    %v603 = vsel %vm36, %v576, 0
    %v606 = vsel %vm36, %v577, 0
    %v609 = vsel %vm36, %v578, 0
    %v612 = vsel %vm36, %v579, 0
    %v615 = vsel %vm36, %v580, 0
    %v618 = vsel %vm36, %v581, 0
    %v621 = vsel %vm36, %v582, 0
    %v624 = vsel %vm36, %v583, 0
    %v627 = vsel %vm36, %v584, 0
    %v630 = vsel %vm36, %v585, 0
    %v633 = vsel %vm36, %v586, 0
    %635 = vmatprep.subr.mxu0 0.0
    %636 = vmatpush1.msra.mxu0 %v28
    %637 = vmatprep.subr.mxu0 0.0
    %638 = vmatpush1.msra.mxu0 %v29
    %639 = vmatprep.subr.mxu0 0.0
    %640 = vmatpush1.msra.mxu0 %v30
    %641 = vmatprep.subr.mxu0 0.0
    %642 = vmatpush1.msra.mxu0 %v31
    %643 = vmatprep.subr.mxu0 0.0
    %644 = vmatpush1.msra.mxu0 0.0
    %645 = vmatprep.subr.mxu0 0.0
    %646 = vmatpush1.msra.mxu0 0.0
    %647 = vmatprep.subr.mxu0 0.0
    %648 = vmatpush1.msra.mxu0 0.0
    %649 = vmatprep.subr.mxu0 0.0
    %650 = vmatpush1.msra.mxu0 0.0
    %651 = vmatprep.subr.mxu0 0.0
    %652 = vmatpush1.msra.mxu0 0.0
    %653 = vmatprep.subr.mxu0 0.0
    %654 = vmatpush1.msra.mxu0 0.0
    %655 = vmatprep.subr.mxu0 0.0
    %656 = vmatpush1.msra.mxu0 0.0
    %657 = vmatprep.subr.mxu0 0.0
    %658 = vmatpush1.msra.mxu0 0.0
    %659 = vmatprep.subr.mxu0 0.0
    %660 = vmatpush1.msra.mxu0 0.0
    %661 = vmatprep.subr.mxu0 0.0
    %662 = vmatpush1.msra.mxu0 0.0
    %663 = vmatprep.subr.mxu0 0.0
    %664 = vmatpush1.msra.mxu0 0.0
    %665 = vmatprep.subr.mxu0 0.0
    %666 = vmatpush1.msra.mxu0 0.0
    %667 = vmatprep.subr.mxu0 0.0
    %668 = vmatpush1.msra.mxu0 0.0
    %669 = vmatprep.subr.mxu0 0.0
    %670 = vmatpush1.msra.mxu0 0.0
    %671 = vmatprep.subr.mxu0 0.0
    %672 = vmatpush1.msra.mxu0 0.0
    %673 = vmatprep.subr.mxu0 0.0
    %674 = vmatpush1.msra.mxu0 0.0
    %675 = vmatprep.subr.mxu0 0.0
    %676 = vmatpush1.msra.mxu0 0.0
    %677 = vmatprep.subr.mxu0 0.0
    %678 = vmatpush1.msra.mxu0 0.0
    %679 = vmatprep.subr.mxu0 0.0
    %680 = vmatpush1.msra.mxu0 0.0
    %681 = vmatprep.subr.mxu0 0.0
    %682 = vmatpush1.msra.mxu0 0.0
    %683 = vmatprep.subr.mxu0 0.0
    %684 = vmatpush1.msra.mxu0 0.0
    %685 = vmatprep.subr.mxu0 0.0
    %686 = vmatpush1.msra.mxu0 0.0
    %687 = vmatprep.subr.mxu0 0.0
    %688 = vmatpush1.msra.mxu0 0.0
    %689 = vmatprep.subr.mxu0 0.0
    %690 = vmatpush1.msra.mxu0 0.0
    %691 = vmatprep.subr.mxu0 0.0
    %692 = vmatpush1.msra.mxu0 0.0
    %693 = vmatprep.subr.mxu0 0.0
    %694 = vmatpush1.msra.mxu0 0.0
    %695 = vmatprep.subr.mxu0 0.0
    %696 = vmatpush1.msra.mxu0 0.0
    %697 = vmatprep.subr.mxu0 0.0
    %698 = vmatpush1.msra.mxu0 0.0
    %699 = vmatprep.mubr.f32.mxu0 0.0
    %700 = vmatmul.mubr.f32.gmra.mrb[0].mxu0 %v588
    %v701 = vpop.f32.mrb[0].mxu0
    %v702 = vadd.f32 0.0, %v701
    %v703 = vpop.f32.mrb[0].mxu0
    %704 = vmatprep.mubr.f32.mxu0 0.0
    %705 = vmatmul.mubr.f32.gmra.mrb[0].mxu0 %v591
    %v706 = vpop.f32.mrb[0].mxu0
    %v707 = vadd.f32 0.0, %v706
    %v708 = vpop.f32.mrb[0].mxu0
    %709 = vmatprep.mubr.f32.mxu0 0.0
    %710 = vmatmul.mubr.f32.gmra.mrb[0].mxu0 %v594
    %v711 = vpop.f32.mrb[0].mxu0
    %v712 = vadd.f32 0.0, %v711
    %v713 = vpop.f32.mrb[0].mxu0
    %714 = vmatprep.mubr.f32.mxu0 0.0
    %715 = vmatmul.mubr.f32.gmra.mrb[0].mxu0 %v597
    %v716 = vpop.f32.mrb[0].mxu0
    %v717 = vadd.f32 0.0, %v716
    %v718 = vpop.f32.mrb[0].mxu0
    %719 = vmatprep.mubr.f32.mxu0 0.0
    %720 = vmatmul.mubr.f32.gmra.mrb[0].mxu0 %v600
    %v721 = vpop.f32.mrb[0].mxu0
    %v722 = vadd.f32 0.0, %v721
    %v723 = vpop.f32.mrb[0].mxu0
    %724 = vmatprep.mubr.f32.mxu0 0.0
    %725 = vmatmul.mubr.f32.gmra.mrb[0].mxu0 %v603
    %v726 = vpop.f32.mrb[0].mxu0
    %v727 = vadd.f32 0.0, %v726
    %v728 = vpop.f32.mrb[0].mxu0
    %729 = vmatprep.mubr.f32.mxu0 0.0
    %730 = vmatmul.mubr.f32.gmra.mrb[0].mxu0 %v606
    %v731 = vpop.f32.mrb[0].mxu0
    %v732 = vadd.f32 0.0, %v731
    %v733 = vpop.f32.mrb[0].mxu0
    %734 = vmatprep.mubr.f32.mxu0 0.0
    %735 = vmatmul.mubr.f32.gmra.mrb[0].mxu0 %v609
    %v736 = vpop.f32.mrb[0].mxu0
    %v737 = vadd.f32 0.0, %v736
    %v738 = vpop.f32.mrb[0].mxu0
    %739 = vmatprep.mubr.f32.mxu0 0.0
    %740 = vmatmul.mubr.f32.gmra.mrb[0].mxu0 %v612
    %v741 = vpop.f32.mrb[0].mxu0
    %v742 = vadd.f32 0.0, %v741
    %v743 = vpop.f32.mrb[0].mxu0
    %744 = vmatprep.mubr.f32.mxu0 0.0
    %745 = vmatmul.mubr.f32.gmra.mrb[0].mxu0 %v615
    %v746 = vpop.f32.mrb[0].mxu0
    %v747 = vadd.f32 0.0, %v746
    %v748 = vpop.f32.mrb[0].mxu0
    %749 = vmatprep.mubr.f32.mxu0 0.0
    %750 = vmatmul.mubr.f32.gmra.mrb[0].mxu0 %v618
    %v751 = vpop.f32.mrb[0].mxu0
    %v752 = vadd.f32 0.0, %v751
    %v753 = vpop.f32.mrb[0].mxu0
    %754 = vmatprep.mubr.f32.mxu0 0.0
    %755 = vmatmul.mubr.f32.gmra.mrb[0].mxu0 %v621
    %v756 = vpop.f32.mrb[0].mxu0
    %v757 = vadd.f32 0.0, %v756
    %v758 = vpop.f32.mrb[0].mxu0
    %759 = vmatprep.mubr.f32.mxu0 0.0
    %760 = vmatmul.mubr.f32.gmra.mrb[0].mxu0 %v624
    %v761 = vpop.f32.mrb[0].mxu0
    %v762 = vadd.f32 0.0, %v761
    %v763 = vpop.f32.mrb[0].mxu0
    %764 = vmatprep.mubr.f32.mxu0 0.0
    %765 = vmatmul.mubr.f32.gmra.mrb[0].mxu0 %v627
    %v766 = vpop.f32.mrb[0].mxu0
    %v767 = vadd.f32 0.0, %v766
    %v768 = vpop.f32.mrb[0].mxu0
    %769 = vmatprep.mubr.f32.mxu0 0.0
    %770 = vmatmul.mubr.f32.gmra.mrb[0].mxu0 %v630
    %v771 = vpop.f32.mrb[0].mxu0
    %v772 = vadd.f32 0.0, %v771
    %v773 = vpop.f32.mrb[0].mxu0
    %774 = vmatprep.mubr.f32.mxu0 0.0
    %775 = vmatmul.mubr.f32.gmra.mrb[0].mxu0 %v633
    %v776 = vpop.f32.mrb[0].mxu0
    %v777 = vadd.f32 0.0, %v776
    %v778 = vpop.f32.mrb[0].mxu0
    %779 = vdwg.mxu0
    %v780 = vsel %vm36, %v702, -inf
    %v781 = vsel %vm36, %v712, -inf
    %v782 = vsel %vm36, %v722, -inf
    %v783 = vmax.f32 %v780, %v782
    %v784 = vsel %vm36, %v732, -inf
    %v785 = vmax.f32 %v781, %v784
    %v786 = vsel %vm36, %v742, -inf
    %v787 = vmax.f32 %v783, %v786
    %v788 = vsel %vm36, %v752, -inf
    %v789 = vmax.f32 %v785, %v788
    %v790 = vsel %vm36, %v762, -inf
    %v791 = vmax.f32 %v787, %v790
    %v792 = vsel %vm36, %v772, -inf
    %v793 = vmax.f32 %v789, %v792
    %v794 = vmax.f32 %v791, %v793
    %v795 = vsel %vm36, %v707, -inf
    %v796 = vsel %vm36, %v717, -inf
    %v797 = vsel %vm36, %v727, -inf
    %v798 = vmax.f32 %v795, %v797
    %v799 = vsel %vm36, %v737, -inf
    %v800 = vmax.f32 %v796, %v799
    %v801 = vsel %vm36, %v747, -inf
    %v802 = vmax.f32 %v798, %v801
    %v803 = vsel %vm36, %v757, -inf
    %v804 = vmax.f32 %v800, %v803
    %v805 = vsel %vm36, %v767, -inf
    %v806 = vmax.f32 %v802, %v805
    %v807 = vsel %vm36, %v777, -inf
    %v808 = vmax.f32 %v804, %v807
    %v809 = vmax.f32 %v806, %v808
    %v810 = vsub.f32 %v702, %v794
    %v811 = vsub.f32 %v707, %v809
    %v812 = vsub.f32 %v712, %v794
    %v813 = vsub.f32 %v717, %v809
    %v814 = vsub.f32 %v722, %v794
    %v815 = vsub.f32 %v727, %v809
    %v816 = vsub.f32 %v732, %v794
    %v817 = vsub.f32 %v737, %v809
    %v818 = vsub.f32 %v742, %v794
    %v819 = vsub.f32 %v747, %v809
    %v820 = vsub.f32 %v752, %v794
    %v821 = vsub.f32 %v757, %v809
    %v822 = vsub.f32 %v762, %v794
    %v823 = vsub.f32 %v767, %v809
    %v824 = vsub.f32 %v772, %v794
    %v825 = vsub.f32 %v777, %v809
    %v826 = vmul.f32 %v810, 1.442695
    %v827 = vpow.pop %v826
    %v828 = vmul.f32 %v811, 1.442695
    %v829 = vpow.pop %v828
    %v830 = vmul.f32 %v812, 1.442695
    %v831 = vpow.pop %v830
    %v832 = vmul.f32 %v813, 1.442695
    %v833 = vpow.pop %v832
    %v834 = vmul.f32 %v814, 1.442695
    %v835 = vpow.pop %v834
    %v836 = vmul.f32 %v815, 1.442695
    %v837 = vpow.pop %v836
    %v838 = vmul.f32 %v816, 1.442695
    %v839 = vpow.pop %v838
    %v840 = vmul.f32 %v817, 1.442695
    %v841 = vpow.pop %v840
    %v842 = vmul.f32 %v818, 1.442695
    %v843 = vpow.pop %v842
    %v844 = vmul.f32 %v819, 1.442695
    %v845 = vpow.pop %v844
    %v846 = vmul.f32 %v820, 1.442695
    %v847 = vpow.pop %v846
    %v848 = vmul.f32 %v821, 1.442695
    %v849 = vpow.pop %v848
    %v850 = vmul.f32 %v822, 1.442695
    %v851 = vpow.pop %v850
    %v852 = vmul.f32 %v823, 1.442695
    %v853 = vpow.pop %v852
    %v854 = vmul.f32 %v824, 1.442695
    %v855 = vpow.pop %v854
    %v856 = vmul.f32 %v825, 1.442695
    %v857 = vpow.pop %v856
    %v858 = vsel %vm36, %v827, 0.0
    %v859 = vsel %vm36, %v831, 0.0
    %v860 = vadd.f32 %v858, %v859
    %v861 = vsel %vm36, %v835, 0.0
    %v862 = vadd.f32 %v860, %v861
    %v863 = vsel %vm36, %v839, 0.0
    %v864 = vadd.f32 %v862, %v863
    %v865 = vsel %vm36, %v843, 0.0
    %v866 = vadd.f32 %v864, %v865
    %v867 = vsel %vm36, %v847, 0.0
    %v868 = vadd.f32 %v866, %v867
    %v869 = vsel %vm36, %v851, 0.0
    %v870 = vadd.f32 %v868, %v869
    %v871 = vsel %vm36, %v855, 0.0
    %v872 = vadd.f32 %v870, %v871
    %v873 = vsel %vm36, %v829, 0.0
    %v874 = vsel %vm36, %v833, 0.0
    %v875 = vadd.f32 %v873, %v874
    %v876 = vsel %vm36, %v837, 0.0
    %v877 = vadd.f32 %v875, %v876
    %v878 = vsel %vm36, %v841, 0.0
    %v879 = vadd.f32 %v877, %v878
    %v880 = vsel %vm36, %v845, 0.0
    %v881 = vadd.f32 %v879, %v880
    %v882 = vsel %vm36, %v849, 0.0
    %v883 = vadd.f32 %v881, %v882
    %v884 = vsel %vm36, %v853, 0.0
    %v885 = vadd.f32 %v883, %v884
    %v886 = vsel %vm36, %v857, 0.0
    %v887 = vadd.f32 %v885, %v886
    %v888 = vrcp.pop %v872
    %v889 = vrcp.pop %v887
    %v890 = vmul.f32 %v827, %v888
    %v891 = vmul.f32 %v829, %v889
    %v892 = vmul.f32 %v831, %v888
    %v893 = vmul.f32 %v833, %v889
    %v894 = vmul.f32 %v835, %v888
    %v895 = vmul.f32 %v837, %v889
    %v896 = vmul.f32 %v839, %v888
    %v897 = vmul.f32 %v841, %v889
    %v898 = vmul.f32 %v843, %v888
    %v899 = vmul.f32 %v845, %v889
    %v900 = vmul.f32 %v847, %v888
    %v901 = vmul.f32 %v849, %v889
    %v902 = vmul.f32 %v851, %v888
    %v903 = vmul.f32 %v853, %v889
    %v904 = vmul.f32 %v855, %v888
    %v905 = vmul.f32 %v857, %v889
    %v906 = vmul.f32 %v890, %v493
    %v907 = vmul.f32 %v891, %v498
    %v908 = vmul.f32 %v892, %v503
    %v909 = vmul.f32 %v893, %v508
    %v910 = vmul.f32 %v894, %v513
    %v911 = vmul.f32 %v895, %v518
    %v912 = vmul.f32 %v896, %v523
    %v913 = vmul.f32 %v897, %v528
    %v914 = vmul.f32 %v898, %v533
    %v915 = vmul.f32 %v899, %v538
    %v916 = vmul.f32 %v900, %v543
    %v917 = vmul.f32 %v901, %v548
    %v918 = vmul.f32 %v902, %v553
    %v919 = vmul.f32 %v903, %v558
    %v920 = vmul.f32 %v904, %v563
    %v921 = vmul.f32 %v905, %v568
    %v922 = vsel %vm36, %v906, 0.0
    %v923 = vsel %vm36, %v908, 0.0
    %v924 = vadd.f32 %v922, %v923
    %v925 = vsel %vm36, %v910, 0.0
    %v926 = vadd.f32 %v924, %v925
    %v927 = vsel %vm36, %v912, 0.0
    %v928 = vadd.f32 %v926, %v927
    %v929 = vsel %vm36, %v914, 0.0
    %v930 = vadd.f32 %v928, %v929
    %v931 = vsel %vm36, %v916, 0.0
    %v932 = vadd.f32 %v930, %v931
    %v933 = vsel %vm36, %v918, 0.0
    %v934 = vadd.f32 %v932, %v933
    %v935 = vsel %vm36, %v920, 0.0
    %v936 = vadd.f32 %v934, %v935
    %v937 = vsel %vm36, %v907, 0.0
    %v938 = vsel %vm36, %v909, 0.0
    %v939 = vadd.f32 %v937, %v938
    %v940 = vsel %vm36, %v911, 0.0
    %v941 = vadd.f32 %v939, %v940
    %v942 = vsel %vm36, %v913, 0.0
    %v943 = vadd.f32 %v941, %v942
    %v944 = vsel %vm36, %v915, 0.0
    %v945 = vadd.f32 %v943, %v944
    %v946 = vsel %vm36, %v917, 0.0
    %v947 = vadd.f32 %v945, %v946
    %v948 = vsel %vm36, %v919, 0.0
    %v949 = vadd.f32 %v947, %v948
    %v950 = vsel %vm36, %v921, 0.0
    %v951 = vadd.f32 %v949, %v950
    %952 = vrot.lane.b32.xlu0 %v23, 32
    %v953 = vpop.permute.xlu0 %952
    %954 = vrot.lane.b32.xlu0 %v24, 32
    %v955 = vpop.permute.xlu0 %954
    %956 = vrot.lane.b32.xlu0 %v25, 32
    %v957 = vpop.permute.xlu0 %956
    %958 = vrot.lane.b32.xlu0 %v26, 32
    %v959 = vpop.permute.xlu0 %958
    %964 = vrot.lane.b32.xlu0 %v35, 32
    %v965 = vpop.permute.xlu0 %964
    %v968 = vsel %vm36, %v936, 0
    %v971 = vsel %vm36, %v951, 0
    %973 = vmatprep.subr.mxu0 0.0
    %974 = vmatpush1.msra.mxu0 %v953
    %975 = vmatprep.subr.mxu0 0.0
    %976 = vmatpush1.msra.mxu0 %v955
    %977 = vmatprep.subr.mxu0 0.0
    %978 = vmatpush1.msra.mxu0 %v957
    %979 = vmatprep.subr.mxu0 0.0
    %980 = vmatpush1.msra.mxu0 %v959
    %981 = vmatprep.subr.mxu0 0.0
    %982 = vmatpush1.msra.mxu0 0.0
    %983 = vmatprep.subr.mxu0 0.0
    %984 = vmatpush1.msra.mxu0 0.0
    %985 = vmatprep.subr.mxu0 0.0
    %986 = vmatpush1.msra.mxu0 0.0
    %987 = vmatprep.subr.mxu0 0.0
    %988 = vmatpush1.msra.mxu0 0.0
    %989 = vmatprep.subr.mxu0 0.0
    %990 = vmatpush1.msra.mxu0 0.0
    %991 = vmatprep.subr.mxu0 0.0
    %992 = vmatpush1.msra.mxu0 0.0
    %993 = vmatprep.subr.mxu0 0.0
    %994 = vmatpush1.msra.mxu0 0.0
    %995 = vmatprep.subr.mxu0 0.0
    %996 = vmatpush1.msra.mxu0 0.0
    %997 = vmatprep.subr.mxu0 0.0
    %998 = vmatpush1.msra.mxu0 0.0
    %999 = vmatprep.subr.mxu0 0.0
    %1000 = vmatpush1.msra.mxu0 0.0
    %1001 = vmatprep.subr.mxu0 0.0
    %1002 = vmatpush1.msra.mxu0 0.0
    %1003 = vmatprep.subr.mxu0 0.0
    %1004 = vmatpush1.msra.mxu0 0.0
    %1005 = vmatprep.subr.mxu0 0.0
    %1006 = vmatpush1.msra.mxu0 0.0
    %1007 = vmatprep.subr.mxu0 0.0
    %1008 = vmatpush1.msra.mxu0 0.0
    %1009 = vmatprep.subr.mxu0 0.0
    %1010 = vmatpush1.msra.mxu0 0.0
    %1011 = vmatprep.subr.mxu0 0.0
    %1012 = vmatpush1.msra.mxu0 0.0
    %1013 = vmatprep.subr.mxu0 0.0
    %1014 = vmatpush1.msra.mxu0 0.0
    %1015 = vmatprep.subr.mxu0 0.0
    %1016 = vmatpush1.msra.mxu0 0.0
    %1017 = vmatprep.subr.mxu0 0.0
    %1018 = vmatpush1.msra.mxu0 0.0
    %1019 = vmatprep.subr.mxu0 0.0
    %1020 = vmatpush1.msra.mxu0 0.0
    %1021 = vmatprep.subr.mxu0 0.0
    %1022 = vmatpush1.msra.mxu0 0.0
    %1023 = vmatprep.subr.mxu0 0.0
    %1024 = vmatpush1.msra.mxu0 0.0
    %1025 = vmatprep.subr.mxu0 0.0
    %1026 = vmatpush1.msra.mxu0 0.0
    %1027 = vmatprep.subr.mxu0 0.0
    %1028 = vmatpush1.msra.mxu0 0.0
    %1029 = vmatprep.subr.mxu0 0.0
    %1030 = vmatpush1.msra.mxu0 0.0
    %1031 = vmatprep.subr.mxu0 0.0
    %1032 = vmatpush1.msra.mxu0 0.0
    %1033 = vmatprep.subr.mxu0 0.0
    %1034 = vmatpush1.msra.mxu0 0.0
    %1035 = vmatprep.subr.mxu0 0.0
    %1036 = vmatpush1.msra.mxu0 0.0
    %1037 = vmatprep.mubr.f32.mxu0 0.0
    %1038 = vmatmul.mubr.f32.gmra.mrb[0].mxu0 %v968
    %v1039 = vpop.f32.mrb[0].mxu0
    %v1040 = vadd.f32 %v965, %v1039
    %v1041 = vpop.f32.mrb[0].mxu0
    %1042 = vmatprep.mubr.f32.mxu0 0.0
    %1043 = vmatmul.mubr.f32.gmra.mrb[0].mxu0 %v971
    %v1044 = vpop.f32.mrb[0].mxu0
    %v1045 = vadd.f32 %v965, %v1044
    %v1046 = vpop.f32.mrb[0].mxu0
    %1047 = vdwg.mxu0
    %v1048 = vsel %vm36, %v1040, 0.0
    %1049 = vadd.xlane.f32.xlu0 %v1048
    %v1050 = vpop.xlane.xlu0 %1049
    %v1051 = vsel %vm36, %v1045, 0.0
    %1052 = vadd.xlane.f32.xlu0 %v1051
    %v1053 = vpop.xlane.xlu0 %1052
    %v1054 = vrcp.pop 32.0
    %v1055 = vmul.f32 %v1050, %v1054
    %v1056 = vmul.f32 %v1053, %v1054
    %v1057 = vsub.f32 %v1040, %v1055
    %v1058 = vsub.f32 %v1045, %v1056
    %v1059 = vmul.f32 %v1057, %v1057
    %v1060 = vmul.f32 %v1058, %v1058
    %v1061 = vsel %vm36, %v1059, 0.0
    %1062 = vadd.xlane.f32.xlu0 %v1061
    %v1063 = vpop.xlane.xlu0 %1062
    %v1064 = vsel %vm36, %v1060, 0.0
    %1065 = vadd.xlane.f32.xlu0 %v1064
    %v1066 = vpop.xlane.xlu0 %1065
    %v1067 = vmul.f32 %v1063, %v1054
    %v1068 = vmul.f32 %v1066, %v1054
    %v1069 = vadd.f32 %v1067, 1e-05
    %v1070 = vadd.f32 %v1068, 1e-05
    %v1071 = vrsqrt.pop %v1069
    %v1072 = vrsqrt.pop %v1070
    %v1073 = vmul.f32 %v1057, %v1071
    %v1074 = vmul.f32 %v1058, %v1072
    %v1075 = vlaneseq
    %v1076 = vshrl.u32 %v1075, 7
    %v1077 = vsub.s32 1, %v1076
    %v1078 = vrot.slane %v27, %v1077
    %v1079 = vmul.f32 %v1073, %v1078
    %v1080 = vmul.f32 %v1074, %v1078
    %1082 = vrot.lane.b32.xlu0 %v1078, 96
    %v1083 = vpop.permute.xlu0 %1082
    %v1085 = vadd.f32 %v1079, %v1083
    %v1086 = vadd.f32 %v1080, %v1083
    %v1087 = vadd.f32 %v21, %v1085
    %v1088 = vadd.f32 %v22, %v1086
    %1089 = vst.msk [vmem:[#allocation2] sm:$0xff] %vm36, %v1087
    %1090 = vst.msk [vmem:[#allocation2 + $0x8] sm:$0xff] %vm36, %v1088
    // Predicated region
    $region22: #{tpu_custom_call.1} parent=1 // pred_check
      _
    $region23: #{tpu_custom_call.1} parent=1 // pred_check_branch
      %1092 = sbr.rel (0) target = $region25
    $region24: #{tpu_custom_call.1} parent=1 // pred_region
      %s1094 = ssub.s32 256, 256
      %1095 = vsyncadd [#allocation3], %s1094
      %s1096 = sshll.u32 [#allocation2], 4
      %s1097 = int_to_ptr.vmem [resolvable:$true] %s1096
      %1102 = dma.vmem_to_hbm [thread:$0]  %s1097, 256, %s5, [#allocation3], 128, 128, 8
    $region25: #{tpu_custom_call.1} parent=1 // pred_fallthru
      _
    // Predicated region
    $region26: #{tpu_custom_call.1} parent=1 // pred_check
      _
    $region27: #{tpu_custom_call.1} parent=1 // pred_check_branch
      %1104 = sbr.rel (0) target = $region29
    $region28: #{tpu_custom_call.1} parent=1 // pred_region
      %1105 = dma.done [#allocation3], 256
    $region29: #{tpu_custom_call.1} parent=1 // pred_fallthru
      _
    %1106 = vsyncpa [#allocation3], 1

</llo_original>
